<compile_context>
chip_gen: v5e
topology: v5e:2x2
jax: 0.10.0
libtpu: 0.0.40
codegen_flags: <defaults>
</compile_context>

<pallas_src>
import functools

import jax
import jax.numpy as jnp
from jax.experimental import pallas as pl
from jax.experimental.pallas import tpu as pltpu


def mae_kernel(x_ref, m_ref,
               w1, b1, w2, b2, w3, b3, w4, b4, w5, b5, w6, b6,
               out_ref):
    """One batch tile of the fused 6-layer MLP forward.

    x_ref   : (bt, input_dim) f32
    m_ref   : (bt, input_dim) int8 (0/1 mask)
    w*      : (in, out)  f32   (transposed vs. PyTorch nn.Linear.weight)
    b*      : (1, out)   f32
    out_ref : (bt, input_dim) f32
    """
    xm = x_ref[...] * m_ref[...].astype(jnp.float32)

    def dense(h, w_ref, b_ref, relu):
        acc = jnp.dot(h, w_ref[...], preferred_element_type=jnp.float32)
        acc = acc + b_ref[...]               # (1, N) broadcast bias
        return jnp.maximum(acc, 0.0) if relu else acc

    h = dense(xm, w1, b1, True)    # fc1 + relu
    h = dense(h,  w2, b2, True)    # fc2 + relu
    h = dense(h,  w3, b3, False)   # fc3 (latent)
    h = dense(h,  w4, b4, True)    # fc4 + relu
    h = dense(h,  w5, b5, True)    # fc5 + relu
    h = dense(h,  w6, b6, False)   # fc6 (reconstruction)
    out_ref[...] = h.astype(out_ref.dtype)


def pack_params(params):
    """Pre-pack weights/biases once; reuse the tuple for every forward call."""
    wb = []
    for i in range(1, 7):
        wb.append(jnp.asarray(params[f"w{i}"], jnp.float32))
        wb.append(jnp.asarray(params[f"b{i}"], jnp.float32).reshape(1, -1))
    return tuple(wb)


@functools.partial(jax.jit, static_argnames=("batch_tile",))
def masked_autoencoder_forward(x, mask, wb, *, batch_tile=512):
    """x: (B, input_dim) f32, mask: (B, input_dim) int8/bool/f32 of 0/1 values,
    wb: tuple (w1, b1, ..., w6, b6) from pack_params."""
    B, input_dim = x.shape
    bt = min(batch_tile, B)
    assert B % bt == 0, "batch must be divisible by batch_tile"
    assert bt % 8 == 0 or bt == B, "batch_tile must be a multiple of 8"

    x = x.astype(jnp.float32)
    mask = mask.astype(jnp.int8)   # 1-byte HBM stream; no-op if already int8

    dims = [wb[0].shape[0]] + [wb[2 * i].shape[1] for i in range(6)]
    assert dims[0] == input_dim and dims[6] == input_dim

    batch_map = lambda i: (i, 0)
    const_map = lambda i: (0, 0)

    io_spec = pl.BlockSpec((bt, input_dim), batch_map)       # x and mask tiles
    out_spec = pl.BlockSpec((bt, input_dim), batch_map)      # unpadded output
    w_specs = [pl.BlockSpec(a.shape, const_map) for a in wb]  # resident weights

    # Advisory cost (actual unpadded dims) for XLA scheduling around the call.
    weight_bytes = sum(int(a.size) * a.dtype.itemsize for a in wb)
    flops = 2 * B * sum(dims[i] * dims[i + 1] for i in range(6))
    bytes_accessed = B * input_dim * (4 + 1 + 4) + weight_bytes
    cost = pl.CostEstimate(flops=int(flops), transcendentals=0,
                           bytes_accessed=int(bytes_accessed))

    # Tight VMEM budget: double-buffered x/mask/out tiles + (conservatively
    # double-buffered) weights + live f32 activations, plus modest headroom.
    vmem_need = (2 * bt * input_dim * (4 + 1 + 4)
                 + 2 * weight_bytes
                 + bt * sum(dims) * 4)
    vmem_limit = int(min(vmem_need + (16 << 20), 64 << 20))

    grid = (B // bt,)
    return pl.pallas_call(
        mae_kernel,
        out_shape=jax.ShapeDtypeStruct((B, input_dim), jnp.float32),
        grid_spec=pltpu.PrefetchScalarGridSpec(
            num_scalar_prefetch=0,
            grid=grid,
            in_specs=[io_spec, io_spec] + w_specs,
            out_specs=out_spec,
        ),
        compiler_params=pltpu.CompilerParams(
            dimension_semantics=("parallel",),
            vmem_limit_bytes=vmem_limit),
        cost_estimate=cost,
    )(x, mask, *wb)


def init_params(key, input_dim, first_layer_dim, second_layer_dim, latent_dim):
    """Mirrors nn.Linear default init U(-1/sqrt(fan_in), +1/sqrt(fan_in))."""
    dims = [(input_dim, first_layer_dim),
            (first_layer_dim, second_layer_dim),
            (second_layer_dim, latent_dim),
            (latent_dim, second_layer_dim),
            (second_layer_dim, first_layer_dim),
            (first_layer_dim, input_dim)]
    params = {}
    for idx, (fan_in, fan_out) in enumerate(dims, start=1):
        key, kw, kb = jax.random.split(key, 3)
        bound = 1.0 / jnp.sqrt(fan_in)
        params[f"w{idx}"] = jax.random.uniform(
            kw, (fan_in, fan_out), jnp.float32, -bound, bound)
        params[f"b{idx}"] = jax.random.uniform(
            kb, (1, fan_out), jnp.float32, -bound, bound)
    return params


def reference_forward(x, mask, p):
    """Pure-JAX f32 reference (matches the PyTorch module's forward)."""
    def dense(h, w, b, relu):
        y = jnp.dot(h, w, precision=jax.lax.Precision.HIGHEST) + b.reshape(1, -1)
        return jnp.maximum(y, 0.0) if relu else y

    h = x * mask.astype(x.dtype)
    h = dense(h, p["w1"], p["b1"], True)
    h = dense(h, p["w2"], p["b2"], True)
    h = dense(h, p["w3"], p["b3"], False)
    h = dense(h, p["w4"], p["b4"], True)
    h = dense(h, p["w5"], p["b5"], True)
    h = dense(h, p["w6"], p["b6"], False)
    return h


if __name__ == "__main__":
    # Small, module-consistent shapes.  batch/batch_tile chosen so the grid has
    # 4 steps -> >=2 pipelined steps per TensorCore on v7x.
    batch = 512
    input_dim = 32
    first_layer_dim = 16
    second_layer_dim = 8
    latent_dim = 4

    key = jax.random.PRNGKey(0)
    key, kx, km = jax.random.split(key, 3)
    x = jax.random.normal(kx, (batch, input_dim), jnp.float32)
    # Bernoulli(0.5) mask stored as int8 (small HBM footprint), like the
    # masked-autoencoder training setup.
    mask = jax.random.bernoulli(km, 0.5, (batch, input_dim)).astype(jnp.int8)

    params = init_params(key, input_dim, first_layer_dim,
                         second_layer_dim, latent_dim)
    wb = pack_params(params)   # pre-packed once; reused across calls

    out = masked_autoencoder_forward(x, mask, wb, batch_tile=128)
    out = jax.block_until_ready(out)

    ref = reference_forward(x, mask, params)
    assert out.shape == (batch, input_dim)
    # Tolerance allows for MXU f32-via-bf16-pass rounding vs. HIGHEST-precision ref.
    assert jnp.allclose(out, ref, atol=1e-2, rtol=1e-2), "mismatch vs reference"

    # TODO(synk): training loop (MSE loss / Adam / DataLoader) is host-side and not part of the kernel.
    print("KERNEL_OK")
</pallas_src>

<mosaic_0001>
module attributes {stable_mosaic.version = 11 : i64} {
  func.func @mae_kernel(%arg0: i32, %arg1: memref<128x32xf32, #tpu.memory_space<vmem>>, %arg2: memref<128x32xi8, #tpu.memory_space<vmem>>, %arg3: memref<32x16xf32, #tpu.memory_space<vmem>>, %arg4: memref<1x16xf32, #tpu.memory_space<vmem>>, %arg5: memref<16x8xf32, #tpu.memory_space<vmem>>, %arg6: memref<1x8xf32, #tpu.memory_space<vmem>>, %arg7: memref<8x4xf32, #tpu.memory_space<vmem>>, %arg8: memref<1x4xf32, #tpu.memory_space<vmem>>, %arg9: memref<4x8xf32, #tpu.memory_space<vmem>>, %arg10: memref<1x8xf32, #tpu.memory_space<vmem>>, %arg11: memref<8x16xf32, #tpu.memory_space<vmem>>, %arg12: memref<1x16xf32, #tpu.memory_space<vmem>>, %arg13: memref<16x32xf32, #tpu.memory_space<vmem>>, %arg14: memref<1x32xf32, #tpu.memory_space<vmem>>, %arg15: memref<128x32xf32, #tpu.memory_space<vmem>>) attributes {dimension_semantics = [#tpu.dimension_semantics<parallel>], iteration_bounds = array<i64: 4>, scalar_prefetch = 0 : i64, scratch_operands = 0 : i64, tpu.core_type = #tpu.core_type<tc>, window_params = [{transform_indices = @transform_0, window_bounds = array<i64: 128, 32>}, {transform_indices = @transform_1, window_bounds = array<i64: 128, 32>}, {pipeline_mode = #tpu.pipeline_mode<synchronous>, transform_indices = @transform_2, window_bounds = array<i64: 32, 16>}, {pipeline_mode = #tpu.pipeline_mode<synchronous>, transform_indices = @transform_3, window_bounds = array<i64: 1, 16>}, {pipeline_mode = #tpu.pipeline_mode<synchronous>, transform_indices = @transform_4, window_bounds = array<i64: 16, 8>}, {pipeline_mode = #tpu.pipeline_mode<synchronous>, transform_indices = @transform_5, window_bounds = array<i64: 1, 8>}, {pipeline_mode = #tpu.pipeline_mode<synchronous>, transform_indices = @transform_6, window_bounds = array<i64: 8, 4>}, {pipeline_mode = #tpu.pipeline_mode<synchronous>, transform_indices = @transform_7, window_bounds = array<i64: 1, 4>}, {pipeline_mode = #tpu.pipeline_mode<synchronous>, transform_indices = @transform_8, window_bounds = array<i64: 4, 8>}, {pipeline_mode = #tpu.pipeline_mode<synchronous>, transform_indices = @transform_9, window_bounds = array<i64: 1, 8>}, {pipeline_mode = #tpu.pipeline_mode<synchronous>, transform_indices = @transform_10, window_bounds = array<i64: 8, 16>}, {pipeline_mode = #tpu.pipeline_mode<synchronous>, transform_indices = @transform_11, window_bounds = array<i64: 1, 16>}, {pipeline_mode = #tpu.pipeline_mode<synchronous>, transform_indices = @transform_12, window_bounds = array<i64: 16, 32>}, {pipeline_mode = #tpu.pipeline_mode<synchronous>, transform_indices = @transform_13, window_bounds = array<i64: 1, 32>}, {transform_indices = @transform_14, window_bounds = array<i64: 128, 32>}]} {
    %c0 = arith.constant 0 : index
    %c0_0 = arith.constant 0 : index
    %0 = vector.load %arg1[%c0, %c0_0] : memref<128x32xf32, #tpu.memory_space<vmem>>, vector<128x32xf32>
    %c0_1 = arith.constant 0 : index
    %c0_2 = arith.constant 0 : index
    %1 = vector.load %arg2[%c0_1, %c0_2] : memref<128x32xi8, #tpu.memory_space<vmem>>, vector<128x32xi8>
    %2 = arith.sitofp %1 : vector<128x32xi8> to vector<128x32xf32>
    %3 = arith.mulf %0, %2 : vector<128x32xf32>
    %c0_3 = arith.constant 0 : index
    %c0_4 = arith.constant 0 : index
    %4 = vector.load %arg3[%c0_3, %c0_4] : memref<32x16xf32, #tpu.memory_space<vmem>>, vector<32x16xf32>
    %cst = arith.constant dense<0.000000e+00> : vector<128x16xf32>
    %5 = tpu.matmul %3, %4, %cst {dimension_numbers = #tpu.dot_dimension_numbers<[1], [0], [0], [1], [0, 0, 1, 1], [], []>} : vector<128x32xf32>, vector<32x16xf32>, vector<128x16xf32> -> vector<128x16xf32>
    %c0_5 = arith.constant 0 : index
    %c0_6 = arith.constant 0 : index
    %6 = vector.load %arg4[%c0_5, %c0_6] : memref<1x16xf32, #tpu.memory_space<vmem>>, vector<1x16xf32>
    %7 = vector.broadcast %6 : vector<1x16xf32> to vector<128x16xf32>
    %8 = arith.addf %5, %7 : vector<128x16xf32>
    %cst_7 = arith.constant 0.000000e+00 : f32
    %9 = vector.broadcast %cst_7 : f32 to vector<128x16xf32>
    %10 = arith.maximumf %8, %9 : vector<128x16xf32>
    %c0_8 = arith.constant 0 : index
    %c0_9 = arith.constant 0 : index
    %11 = vector.load %arg5[%c0_8, %c0_9] : memref<16x8xf32, #tpu.memory_space<vmem>>, vector<16x8xf32>
    %cst_10 = arith.constant dense<0.000000e+00> : vector<128x8xf32>
    %12 = tpu.matmul %10, %11, %cst_10 {dimension_numbers = #tpu.dot_dimension_numbers<[1], [0], [0], [1], [0, 0, 1, 1], [], []>} : vector<128x16xf32>, vector<16x8xf32>, vector<128x8xf32> -> vector<128x8xf32>
    %c0_11 = arith.constant 0 : index
    %c0_12 = arith.constant 0 : index
    %13 = vector.load %arg6[%c0_11, %c0_12] : memref<1x8xf32, #tpu.memory_space<vmem>>, vector<1x8xf32>
    %14 = vector.broadcast %13 : vector<1x8xf32> to vector<128x8xf32>
    %15 = arith.addf %12, %14 : vector<128x8xf32>
    %cst_13 = arith.constant 0.000000e+00 : f32
    %16 = vector.broadcast %cst_13 : f32 to vector<128x8xf32>
    %17 = arith.maximumf %15, %16 : vector<128x8xf32>
    %c0_14 = arith.constant 0 : index
    %c0_15 = arith.constant 0 : index
    %18 = vector.load %arg7[%c0_14, %c0_15] : memref<8x4xf32, #tpu.memory_space<vmem>>, vector<8x4xf32>
    %cst_16 = arith.constant dense<0.000000e+00> : vector<128x4xf32>
    %19 = tpu.matmul %17, %18, %cst_16 {dimension_numbers = #tpu.dot_dimension_numbers<[1], [0], [0], [1], [0, 0, 1, 1], [], []>} : vector<128x8xf32>, vector<8x4xf32>, vector<128x4xf32> -> vector<128x4xf32>
    %c0_17 = arith.constant 0 : index
    %c0_18 = arith.constant 0 : index
    %20 = vector.load %arg8[%c0_17, %c0_18] : memref<1x4xf32, #tpu.memory_space<vmem>>, vector<1x4xf32>
    %21 = vector.broadcast %20 : vector<1x4xf32> to vector<128x4xf32>
    %22 = arith.addf %19, %21 : vector<128x4xf32>
    %c0_19 = arith.constant 0 : index
    %c0_20 = arith.constant 0 : index
    %23 = vector.load %arg9[%c0_19, %c0_20] : memref<4x8xf32, #tpu.memory_space<vmem>>, vector<4x8xf32>
    %cst_21 = arith.constant dense<0.000000e+00> : vector<128x8xf32>
    %24 = tpu.matmul %22, %23, %cst_21 {dimension_numbers = #tpu.dot_dimension_numbers<[1], [0], [0], [1], [0, 0, 1, 1], [], []>} : vector<128x4xf32>, vector<4x8xf32>, vector<128x8xf32> -> vector<128x8xf32>
    %c0_22 = arith.constant 0 : index
    %c0_23 = arith.constant 0 : index
    %25 = vector.load %arg10[%c0_22, %c0_23] : memref<1x8xf32, #tpu.memory_space<vmem>>, vector<1x8xf32>
    %26 = vector.broadcast %25 : vector<1x8xf32> to vector<128x8xf32>
    %27 = arith.addf %24, %26 : vector<128x8xf32>
    %cst_24 = arith.constant 0.000000e+00 : f32
    %28 = vector.broadcast %cst_24 : f32 to vector<128x8xf32>
    %29 = arith.maximumf %27, %28 : vector<128x8xf32>
    %c0_25 = arith.constant 0 : index
    %c0_26 = arith.constant 0 : index
    %30 = vector.load %arg11[%c0_25, %c0_26] : memref<8x16xf32, #tpu.memory_space<vmem>>, vector<8x16xf32>
    %cst_27 = arith.constant dense<0.000000e+00> : vector<128x16xf32>
    %31 = tpu.matmul %29, %30, %cst_27 {dimension_numbers = #tpu.dot_dimension_numbers<[1], [0], [0], [1], [0, 0, 1, 1], [], []>} : vector<128x8xf32>, vector<8x16xf32>, vector<128x16xf32> -> vector<128x16xf32>
    %c0_28 = arith.constant 0 : index
    %c0_29 = arith.constant 0 : index
    %32 = vector.load %arg12[%c0_28, %c0_29] : memref<1x16xf32, #tpu.memory_space<vmem>>, vector<1x16xf32>
    %33 = vector.broadcast %32 : vector<1x16xf32> to vector<128x16xf32>
    %34 = arith.addf %31, %33 : vector<128x16xf32>
    %cst_30 = arith.constant 0.000000e+00 : f32
    %35 = vector.broadcast %cst_30 : f32 to vector<128x16xf32>
    %36 = arith.maximumf %34, %35 : vector<128x16xf32>
    %c0_31 = arith.constant 0 : index
    %c0_32 = arith.constant 0 : index
    %37 = vector.load %arg13[%c0_31, %c0_32] : memref<16x32xf32, #tpu.memory_space<vmem>>, vector<16x32xf32>
    %cst_33 = arith.constant dense<0.000000e+00> : vector<128x32xf32>
    %38 = tpu.matmul %36, %37, %cst_33 {dimension_numbers = #tpu.dot_dimension_numbers<[1], [0], [0], [1], [0, 0, 1, 1], [], []>} : vector<128x16xf32>, vector<16x32xf32>, vector<128x32xf32> -> vector<128x32xf32>
    %c0_34 = arith.constant 0 : index
    %c0_35 = arith.constant 0 : index
    %39 = vector.load %arg14[%c0_34, %c0_35] : memref<1x32xf32, #tpu.memory_space<vmem>>, vector<1x32xf32>
    %40 = vector.broadcast %39 : vector<1x32xf32> to vector<128x32xf32>
    %41 = arith.addf %38, %40 : vector<128x32xf32>
    %c0_36 = arith.constant 0 : index
    %c0_37 = arith.constant 0 : index
    %42 = vector.load %arg15[%c0_36, %c0_37] : memref<128x32xf32, #tpu.memory_space<vmem>>, vector<128x32xf32>
    tpu.vector_store %arg15[%c0_36, %c0_37], %41 {strides = array<i32>} : memref<128x32xf32, #tpu.memory_space<vmem>>, vector<128x32xf32>,
    return
  }
  func.func @transform_0(%arg0: i32) -> (i32, i32) {
    %c0_i32 = arith.constant 0 : i32
    %c0_i32_0 = arith.constant 0 : i32
    return %arg0, %c0_i32 : i32, i32
  }
  func.func @transform_1(%arg0: i32) -> (i32, i32) {
    %c0_i32 = arith.constant 0 : i32
    %c0_i32_0 = arith.constant 0 : i32
    return %arg0, %c0_i32 : i32, i32
  }
  func.func @transform_2(%arg0: i32) -> (i32, i32) {
    %c0_i32 = arith.constant 0 : i32
    %c0_i32_0 = arith.constant 0 : i32
    %c0_i32_1 = arith.constant 0 : i32
    return %c0_i32, %c0_i32_0 : i32, i32
  }
  func.func @transform_3(%arg0: i32) -> (i32, i32) {
    %c0_i32 = arith.constant 0 : i32
    %c0_i32_0 = arith.constant 0 : i32
    %c0_i32_1 = arith.constant 0 : i32
    return %c0_i32, %c0_i32_0 : i32, i32
  }
  func.func @transform_4(%arg0: i32) -> (i32, i32) {
    %c0_i32 = arith.constant 0 : i32
    %c0_i32_0 = arith.constant 0 : i32
    %c0_i32_1 = arith.constant 0 : i32
    return %c0_i32, %c0_i32_0 : i32, i32
  }
  func.func @transform_5(%arg0: i32) -> (i32, i32) {
    %c0_i32 = arith.constant 0 : i32
    %c0_i32_0 = arith.constant 0 : i32
    %c0_i32_1 = arith.constant 0 : i32
    return %c0_i32, %c0_i32_0 : i32, i32
  }
  func.func @transform_6(%arg0: i32) -> (i32, i32) {
    %c0_i32 = arith.constant 0 : i32
    %c0_i32_0 = arith.constant 0 : i32
    %c0_i32_1 = arith.constant 0 : i32
    return %c0_i32, %c0_i32_0 : i32, i32
  }
  func.func @transform_7(%arg0: i32) -> (i32, i32) {
    %c0_i32 = arith.constant 0 : i32
    %c0_i32_0 = arith.constant 0 : i32
    %c0_i32_1 = arith.constant 0 : i32
    return %c0_i32, %c0_i32_0 : i32, i32
  }
  func.func @transform_8(%arg0: i32) -> (i32, i32) {
    %c0_i32 = arith.constant 0 : i32
    %c0_i32_0 = arith.constant 0 : i32
    %c0_i32_1 = arith.constant 0 : i32
    return %c0_i32, %c0_i32_0 : i32, i32
  }
  func.func @transform_9(%arg0: i32) -> (i32, i32) {
    %c0_i32 = arith.constant 0 : i32
    %c0_i32_0 = arith.constant 0 : i32
    %c0_i32_1 = arith.constant 0 : i32
    return %c0_i32, %c0_i32_0 : i32, i32
  }
  func.func @transform_10(%arg0: i32) -> (i32, i32) {
    %c0_i32 = arith.constant 0 : i32
    %c0_i32_0 = arith.constant 0 : i32
    %c0_i32_1 = arith.constant 0 : i32
    return %c0_i32, %c0_i32_0 : i32, i32
  }
  func.func @transform_11(%arg0: i32) -> (i32, i32) {
    %c0_i32 = arith.constant 0 : i32
    %c0_i32_0 = arith.constant 0 : i32
    %c0_i32_1 = arith.constant 0 : i32
    return %c0_i32, %c0_i32_0 : i32, i32
  }
  func.func @transform_12(%arg0: i32) -> (i32, i32) {
    %c0_i32 = arith.constant 0 : i32
    %c0_i32_0 = arith.constant 0 : i32
    %c0_i32_1 = arith.constant 0 : i32
    return %c0_i32, %c0_i32_0 : i32, i32
  }
  func.func @transform_13(%arg0: i32) -> (i32, i32) {
    %c0_i32 = arith.constant 0 : i32
    %c0_i32_0 = arith.constant 0 : i32
    %c0_i32_1 = arith.constant 0 : i32
    return %c0_i32, %c0_i32_0 : i32, i32
  }
  func.func @transform_14(%arg0: i32) -> (i32, i32) {
    %c0_i32 = arith.constant 0 : i32
    %c0_i32_0 = arith.constant 0 : i32
    return %arg0, %c0_i32 : i32, i32
  }
}

</mosaic_0001>

<llo_original>
// kernel: masked_autoencoder_forward.1
$region0: #{masked_autoencoder_forward.1}
  #allocation0 [shape = 'u32[]', space=smem, size = 0x4, offset = 0x4, fixed_abs, tag = 'smem constant byte address 0x4 - core index']
  #allocation1 [shape = 'u32[72,128]{1,0:T(1,128)}', space=vmem, size = 0x9000, scoped, tag = 'internal scratch']
  %s0 = inlined_call_operand.vmem [shape: f32[512,32], index: 0, kind: input, shape index: {}]
  %s1 = inlined_call_operand.vmem [shape: s8[512,32], index: 1, kind: input, shape index: {}]
  %s2 = inlined_call_operand.vmem [shape: f32[32,16], index: 2, kind: input, shape index: {}]
  %s3 = inlined_call_operand.vmem [shape: f32[1,16], index: 3, kind: input, shape index: {}]
  %s4 = inlined_call_operand.vmem [shape: f32[16,8], index: 4, kind: input, shape index: {}]
  %s5 = inlined_call_operand.vmem [shape: f32[1,8], index: 5, kind: input, shape index: {}]
  %s6 = inlined_call_operand.vmem [shape: f32[8,4], index: 6, kind: input, shape index: {}]
  %s7 = inlined_call_operand.vmem [shape: f32[1,4], index: 7, kind: input, shape index: {}]
  %s8 = inlined_call_operand.vmem [shape: f32[4,8], index: 8, kind: input, shape index: {}]
  %s9 = inlined_call_operand.vmem [shape: f32[1,8], index: 9, kind: input, shape index: {}]
  %s10 = inlined_call_operand.vmem [shape: f32[8,16], index: 10, kind: input, shape index: {}]
  %s11 = inlined_call_operand.vmem [shape: f32[1,16], index: 11, kind: input, shape index: {}]
  %s12 = inlined_call_operand.vmem [shape: f32[16,32], index: 12, kind: input, shape index: {}]
  %s13 = inlined_call_operand.vmem [shape: f32[1,32], index: 13, kind: input, shape index: {}]
  %s14 = inlined_call_operand.vmem [shape: f32[512,32], index: 14, kind: output, shape index: {}]
  %s15 = sld [smem:[#allocation0]]
  $region89: #{masked_autoencoder_forward.1} parent=0
    _
  %s17 = ssub.s32 1, %s15
  %s18 = scalar_select 0, %s17, %s15
  loop: start=0, step=1, limit=6
  $region2: #{masked_autoencoder_forward.1} parent=0 // loop_pre_header
    _
  $region3: #{masked_autoencoder_forward.1} parent=0 // loop_header
    %s20 = sphi 0, %s24
    %p21 = scmp.ge.s32.totalorder %s20, 6
    %s30 = sphi 0, %s32
    %s33 = sphi 0, %s30
    %s34 = sphi 0, %s33
    %s50 = sphi 0, %s34
    %s56 = sphi 0, %s58
    %s59 = sphi 0, %s56
    %s60 = sphi 0, %s59
    %s76 = sphi 0, %s60
    %s80 = sphi 0, %s80
    %s82 = sphi 0, %s80
    %s83 = sphi 0, %s82
    %s97 = sphi 0, %s83
    %s101 = sphi 0, %s101
    %s103 = sphi 0, %s101
    %s104 = sphi 0, %s103
    %s118 = sphi 0, %s104
    %s122 = sphi 0, %s122
    %s124 = sphi 0, %s122
    %s125 = sphi 0, %s124
    %s139 = sphi 0, %s125
    %s143 = sphi 0, %s143
    %s145 = sphi 0, %s143
    %s146 = sphi 0, %s145
    %s160 = sphi 0, %s146
    %s164 = sphi 0, %s164
    %s166 = sphi 0, %s164
    %s167 = sphi 0, %s166
    %s181 = sphi 0, %s167
    %s185 = sphi 0, %s185
    %s187 = sphi 0, %s185
    %s188 = sphi 0, %s187
    %s202 = sphi 0, %s188
    %s206 = sphi 0, %s206
    %s208 = sphi 0, %s206
    %s209 = sphi 0, %s208
    %s223 = sphi 0, %s209
    %s227 = sphi 0, %s227
    %s229 = sphi 0, %s227
    %s230 = sphi 0, %s229
    %s244 = sphi 0, %s230
    %s248 = sphi 0, %s248
    %s250 = sphi 0, %s248
    %s251 = sphi 0, %s250
    %s265 = sphi 0, %s251
    %s269 = sphi 0, %s269
    %s271 = sphi 0, %s269
    %s272 = sphi 0, %s271
    %s286 = sphi 0, %s272
    %s290 = sphi 0, %s290
    %s292 = sphi 0, %s290
    %s293 = sphi 0, %s292
    %s307 = sphi 0, %s293
    %s311 = sphi 0, %s311
    %s313 = sphi 0, %s311
    %s314 = sphi 0, %s313
    %s328 = sphi 0, %s314
    %s334 = sphi 0, %s336
    %s337 = sphi 0, %s334
    %s338 = sphi 0, %s337
    %s354 = sphi 0, %s338
  $region4: #{masked_autoencoder_forward.1} parent=0 // loop_header_branch
    %23 = sbr.rel (%p21) target = $region8
  $region5: #{masked_autoencoder_forward.1} parent=0 // loop_body
    %s25 = ssub.s32 %s20, 1
    %s26 = ssub.s32 %s20, 2
    %s27 = sadd.s32 %s20, 1
    %s28 = ssub.s32 %s20, %s27
    %p29 = scmp.eq.s32.totalorder %s28, 0
    %s31 = sadd.s32 %s30, 1
    %s32 = scalar_select %p29, %s30, %s31
    %p35 = pneg %p29
    %p36 = scmp.eq.s32.totalorder %s20, 3
    %p37 = por %p35, %p36
    %p38 = scmp.ne.s32.totalorder %s30, %s33
    %p39 = scmp.eq.s32.totalorder %s20, 0
    %p40 = por %p38, %p39
    %p41 = scmp.ne.s32.totalorder %s30, %s33
    %p42 = scmp.eq.s32.totalorder %s25, 3
    %p43 = por %p41, %p42
    %p44 = scmp.ne.s32.totalorder %s33, %s34
    %p45 = scmp.eq.s32.totalorder %s25, 0
    %p46 = por %p44, %p45
    %p47 = scmp.ne.s32.totalorder %s33, %s34
    %p48 = scmp.eq.s32.totalorder %s26, 3
    %p49 = por %p47, %p48
    %p51 = scmp.ne.s32.totalorder %s34, %s50
    %p52 = scmp.eq.s32.totalorder %s26, 0
    %p53 = por %p51, %p52
    %s54 = ssub.s32 %s20, %s27
    %p55 = scmp.eq.s32.totalorder %s54, 0
    %s57 = sadd.s32 %s56, 1
    %s58 = scalar_select %p55, %s56, %s57
    %p61 = pneg %p55
    %p62 = scmp.eq.s32.totalorder %s20, 3
    %p63 = por %p61, %p62
    %p64 = scmp.ne.s32.totalorder %s56, %s59
    %p65 = scmp.eq.s32.totalorder %s20, 0
    %p66 = por %p64, %p65
    %p67 = scmp.ne.s32.totalorder %s56, %s59
    %p68 = scmp.eq.s32.totalorder %s25, 3
    %p69 = por %p67, %p68
    %p70 = scmp.ne.s32.totalorder %s59, %s60
    %p71 = scmp.eq.s32.totalorder %s25, 0
    %p72 = por %p70, %p71
    %p73 = scmp.ne.s32.totalorder %s59, %s60
    %p74 = scmp.eq.s32.totalorder %s26, 3
    %p75 = por %p73, %p74
    %p77 = scmp.ne.s32.totalorder %s60, %s76
    %p78 = scmp.eq.s32.totalorder %s26, 0
    %p79 = por %p77, %p78
    %s81 = sadd.s32 %s80, 1
    %p84 = scmp.eq.s32.totalorder %s20, 3
    %p85 = scmp.ne.s32.totalorder %s80, %s82
    %p86 = scmp.eq.s32.totalorder %s20, 0
    %p87 = por %p85, %p86
    %p88 = scmp.ne.s32.totalorder %s80, %s82
    %p89 = scmp.eq.s32.totalorder %s25, 3
    %p90 = por %p88, %p89
    %p91 = scmp.ne.s32.totalorder %s82, %s83
    %p92 = scmp.eq.s32.totalorder %s25, 0
    %p93 = por %p91, %p92
    %p94 = scmp.ne.s32.totalorder %s82, %s83
    %p95 = scmp.eq.s32.totalorder %s26, 3
    %p96 = por %p94, %p95
    %p98 = scmp.ne.s32.totalorder %s83, %s97
    %p99 = scmp.eq.s32.totalorder %s26, 0
    %p100 = por %p98, %p99
    %s102 = sadd.s32 %s101, 1
    %p105 = scmp.eq.s32.totalorder %s20, 3
    %p106 = scmp.ne.s32.totalorder %s101, %s103
    %p107 = scmp.eq.s32.totalorder %s20, 0
    %p108 = por %p106, %p107
    %p109 = scmp.ne.s32.totalorder %s101, %s103
    %p110 = scmp.eq.s32.totalorder %s25, 3
    %p111 = por %p109, %p110
    %p112 = scmp.ne.s32.totalorder %s103, %s104
    %p113 = scmp.eq.s32.totalorder %s25, 0
    %p114 = por %p112, %p113
    %p115 = scmp.ne.s32.totalorder %s103, %s104
    %p116 = scmp.eq.s32.totalorder %s26, 3
    %p117 = por %p115, %p116
    %p119 = scmp.ne.s32.totalorder %s104, %s118
    %p120 = scmp.eq.s32.totalorder %s26, 0
    %p121 = por %p119, %p120
    %s123 = sadd.s32 %s122, 1
    %p126 = scmp.eq.s32.totalorder %s20, 3
    %p127 = scmp.ne.s32.totalorder %s122, %s124
    %p128 = scmp.eq.s32.totalorder %s20, 0
    %p129 = por %p127, %p128
    %p130 = scmp.ne.s32.totalorder %s122, %s124
    %p131 = scmp.eq.s32.totalorder %s25, 3
    %p132 = por %p130, %p131
    %p133 = scmp.ne.s32.totalorder %s124, %s125
    %p134 = scmp.eq.s32.totalorder %s25, 0
    %p135 = por %p133, %p134
    %p136 = scmp.ne.s32.totalorder %s124, %s125
    %p137 = scmp.eq.s32.totalorder %s26, 3
    %p138 = por %p136, %p137
    %p140 = scmp.ne.s32.totalorder %s125, %s139
    %p141 = scmp.eq.s32.totalorder %s26, 0
    %p142 = por %p140, %p141
    %s144 = sadd.s32 %s143, 1
    %p147 = scmp.eq.s32.totalorder %s20, 3
    %p148 = scmp.ne.s32.totalorder %s143, %s145
    %p149 = scmp.eq.s32.totalorder %s20, 0
    %p150 = por %p148, %p149
    %p151 = scmp.ne.s32.totalorder %s143, %s145
    %p152 = scmp.eq.s32.totalorder %s25, 3
    %p153 = por %p151, %p152
    %p154 = scmp.ne.s32.totalorder %s145, %s146
    %p155 = scmp.eq.s32.totalorder %s25, 0
    %p156 = por %p154, %p155
    %p157 = scmp.ne.s32.totalorder %s145, %s146
    %p158 = scmp.eq.s32.totalorder %s26, 3
    %p159 = por %p157, %p158
    %p161 = scmp.ne.s32.totalorder %s146, %s160
    %p162 = scmp.eq.s32.totalorder %s26, 0
    %p163 = por %p161, %p162
    %s165 = sadd.s32 %s164, 1
    %p168 = scmp.eq.s32.totalorder %s20, 3
    %p169 = scmp.ne.s32.totalorder %s164, %s166
    %p170 = scmp.eq.s32.totalorder %s20, 0
    %p171 = por %p169, %p170
    %p172 = scmp.ne.s32.totalorder %s164, %s166
    %p173 = scmp.eq.s32.totalorder %s25, 3
    %p174 = por %p172, %p173
    %p175 = scmp.ne.s32.totalorder %s166, %s167
    %p176 = scmp.eq.s32.totalorder %s25, 0
    %p177 = por %p175, %p176
    %p178 = scmp.ne.s32.totalorder %s166, %s167
    %p179 = scmp.eq.s32.totalorder %s26, 3
    %p180 = por %p178, %p179
    %p182 = scmp.ne.s32.totalorder %s167, %s181
    %p183 = scmp.eq.s32.totalorder %s26, 0
    %p184 = por %p182, %p183
    %s186 = sadd.s32 %s185, 1
    %p189 = scmp.eq.s32.totalorder %s20, 3
    %p190 = scmp.ne.s32.totalorder %s185, %s187
    %p191 = scmp.eq.s32.totalorder %s20, 0
    %p192 = por %p190, %p191
    %p193 = scmp.ne.s32.totalorder %s185, %s187
    %p194 = scmp.eq.s32.totalorder %s25, 3
    %p195 = por %p193, %p194
    %p196 = scmp.ne.s32.totalorder %s187, %s188
    %p197 = scmp.eq.s32.totalorder %s25, 0
    %p198 = por %p196, %p197
    %p199 = scmp.ne.s32.totalorder %s187, %s188
    %p200 = scmp.eq.s32.totalorder %s26, 3
    %p201 = por %p199, %p200
    %p203 = scmp.ne.s32.totalorder %s188, %s202
    %p204 = scmp.eq.s32.totalorder %s26, 0
    %p205 = por %p203, %p204
    %s207 = sadd.s32 %s206, 1
    %p210 = scmp.eq.s32.totalorder %s20, 3
    %p211 = scmp.ne.s32.totalorder %s206, %s208
    %p212 = scmp.eq.s32.totalorder %s20, 0
    %p213 = por %p211, %p212
    %p214 = scmp.ne.s32.totalorder %s206, %s208
    %p215 = scmp.eq.s32.totalorder %s25, 3
    %p216 = por %p214, %p215
    %p217 = scmp.ne.s32.totalorder %s208, %s209
    %p218 = scmp.eq.s32.totalorder %s25, 0
    %p219 = por %p217, %p218
    %p220 = scmp.ne.s32.totalorder %s208, %s209
    %p221 = scmp.eq.s32.totalorder %s26, 3
    %p222 = por %p220, %p221
    %p224 = scmp.ne.s32.totalorder %s209, %s223
    %p225 = scmp.eq.s32.totalorder %s26, 0
    %p226 = por %p224, %p225
    %s228 = sadd.s32 %s227, 1
    %p231 = scmp.eq.s32.totalorder %s20, 3
    %p232 = scmp.ne.s32.totalorder %s227, %s229
    %p233 = scmp.eq.s32.totalorder %s20, 0
    %p234 = por %p232, %p233
    %p235 = scmp.ne.s32.totalorder %s227, %s229
    %p236 = scmp.eq.s32.totalorder %s25, 3
    %p237 = por %p235, %p236
    %p238 = scmp.ne.s32.totalorder %s229, %s230
    %p239 = scmp.eq.s32.totalorder %s25, 0
    %p240 = por %p238, %p239
    %p241 = scmp.ne.s32.totalorder %s229, %s230
    %p242 = scmp.eq.s32.totalorder %s26, 3
    %p243 = por %p241, %p242
    %p245 = scmp.ne.s32.totalorder %s230, %s244
    %p246 = scmp.eq.s32.totalorder %s26, 0
    %p247 = por %p245, %p246
    %s249 = sadd.s32 %s248, 1
    %p252 = scmp.eq.s32.totalorder %s20, 3
    %p253 = scmp.ne.s32.totalorder %s248, %s250
    %p254 = scmp.eq.s32.totalorder %s20, 0
    %p255 = por %p253, %p254
    %p256 = scmp.ne.s32.totalorder %s248, %s250
    %p257 = scmp.eq.s32.totalorder %s25, 3
    %p258 = por %p256, %p257
    %p259 = scmp.ne.s32.totalorder %s250, %s251
    %p260 = scmp.eq.s32.totalorder %s25, 0
    %p261 = por %p259, %p260
    %p262 = scmp.ne.s32.totalorder %s250, %s251
    %p263 = scmp.eq.s32.totalorder %s26, 3
    %p264 = por %p262, %p263
    %p266 = scmp.ne.s32.totalorder %s251, %s265
    %p267 = scmp.eq.s32.totalorder %s26, 0
    %p268 = por %p266, %p267
    %s270 = sadd.s32 %s269, 1
    %p273 = scmp.eq.s32.totalorder %s20, 3
    %p274 = scmp.ne.s32.totalorder %s269, %s271
    %p275 = scmp.eq.s32.totalorder %s20, 0
    %p276 = por %p274, %p275
    %p277 = scmp.ne.s32.totalorder %s269, %s271
    %p278 = scmp.eq.s32.totalorder %s25, 3
    %p279 = por %p277, %p278
    %p280 = scmp.ne.s32.totalorder %s271, %s272
    %p281 = scmp.eq.s32.totalorder %s25, 0
    %p282 = por %p280, %p281
    %p283 = scmp.ne.s32.totalorder %s271, %s272
    %p284 = scmp.eq.s32.totalorder %s26, 3
    %p285 = por %p283, %p284
    %p287 = scmp.ne.s32.totalorder %s272, %s286
    %p288 = scmp.eq.s32.totalorder %s26, 0
    %p289 = por %p287, %p288
    %s291 = sadd.s32 %s290, 1
    %p294 = scmp.eq.s32.totalorder %s20, 3
    %p295 = scmp.ne.s32.totalorder %s290, %s292
    %p296 = scmp.eq.s32.totalorder %s20, 0
    %p297 = por %p295, %p296
    %p298 = scmp.ne.s32.totalorder %s290, %s292
    %p299 = scmp.eq.s32.totalorder %s25, 3
    %p300 = por %p298, %p299
    %p301 = scmp.ne.s32.totalorder %s292, %s293
    %p302 = scmp.eq.s32.totalorder %s25, 0
    %p303 = por %p301, %p302
    %p304 = scmp.ne.s32.totalorder %s292, %s293
    %p305 = scmp.eq.s32.totalorder %s26, 3
    %p306 = por %p304, %p305
    %p308 = scmp.ne.s32.totalorder %s293, %s307
    %p309 = scmp.eq.s32.totalorder %s26, 0
    %p310 = por %p308, %p309
    %s312 = sadd.s32 %s311, 1
    %p315 = scmp.eq.s32.totalorder %s20, 3
    %p316 = scmp.ne.s32.totalorder %s311, %s313
    %p317 = scmp.eq.s32.totalorder %s20, 0
    %p318 = por %p316, %p317
    %p319 = scmp.ne.s32.totalorder %s311, %s313
    %p320 = scmp.eq.s32.totalorder %s25, 3
    %p321 = por %p319, %p320
    %p322 = scmp.ne.s32.totalorder %s313, %s314
    %p323 = scmp.eq.s32.totalorder %s25, 0
    %p324 = por %p322, %p323
    %p325 = scmp.ne.s32.totalorder %s313, %s314
    %p326 = scmp.eq.s32.totalorder %s26, 3
    %p327 = por %p325, %p326
    %p329 = scmp.ne.s32.totalorder %s314, %s328
    %p330 = scmp.eq.s32.totalorder %s26, 0
    %p331 = por %p329, %p330
    %s332 = ssub.s32 %s20, %s27
    %p333 = scmp.eq.s32.totalorder %s332, 0
    %s335 = sadd.s32 %s334, 1
    %s336 = scalar_select %p333, %s334, %s335
    %p339 = pneg %p333
    %p340 = scmp.eq.s32.totalorder %s20, 3
    %p341 = por %p339, %p340
    %p342 = scmp.ne.s32.totalorder %s334, %s337
    %p343 = scmp.eq.s32.totalorder %s20, 0
    %p344 = por %p342, %p343
    %p345 = scmp.ne.s32.totalorder %s334, %s337
    %p346 = scmp.eq.s32.totalorder %s25, 3
    %p347 = por %p345, %p346
    %p348 = scmp.ne.s32.totalorder %s337, %s338
    %p349 = scmp.eq.s32.totalorder %s25, 0
    %p350 = por %p348, %p349
    %p351 = scmp.ne.s32.totalorder %s337, %s338
    %p352 = scmp.eq.s32.totalorder %s26, 3
    %p353 = por %p351, %p352
    %p355 = scmp.ne.s32.totalorder %s338, %s354
    %p356 = scmp.eq.s32.totalorder %s26, 0
    %p357 = por %p355, %p356
    %p358 = scmp.le.s32.totalorder 1, %s20
    %p359 = scmp.lt.s32.totalorder %s20, 5
    %p360 = pnand %p358, %p359
    %p361 = pneg %p360
    // Predicated region
    $region9: #{masked_autoencoder_forward.1} parent=5 // pred_check
      _
    $region10: #{masked_autoencoder_forward.1} parent=5 // pred_check_branch
      %363 = sbr.rel (%p360) target = $region12
    $region11: #{masked_autoencoder_forward.1} parent=5 // pred_region
      %s364 = ssub.s32 %s20, 1
      // Predicated region
      $region13: #{masked_autoencoder_forward.1} parent=11 // pred_check
        %p365 = pneg %p93
      $region14: #{masked_autoencoder_forward.1} parent=11 // pred_check_branch
        %367 = sbr.rel (%p365) target = $region16
      $region15: #{masked_autoencoder_forward.1} parent=11 // pred_region
        _
      $region16: #{masked_autoencoder_forward.1} parent=11 // pred_fallthru
        _
      // Predicated region
      $region17: #{masked_autoencoder_forward.1} parent=11 // pred_check
        %p368 = pneg %p114
      $region18: #{masked_autoencoder_forward.1} parent=11 // pred_check_branch
        %370 = sbr.rel (%p368) target = $region20
      $region19: #{masked_autoencoder_forward.1} parent=11 // pred_region
        _
      $region20: #{masked_autoencoder_forward.1} parent=11 // pred_fallthru
        _
      // Predicated region
      $region21: #{masked_autoencoder_forward.1} parent=11 // pred_check
        %p371 = pneg %p135
      $region22: #{masked_autoencoder_forward.1} parent=11 // pred_check_branch
        %373 = sbr.rel (%p371) target = $region24
      $region23: #{masked_autoencoder_forward.1} parent=11 // pred_region
        _
      $region24: #{masked_autoencoder_forward.1} parent=11 // pred_fallthru
        _
      // Predicated region
      $region25: #{masked_autoencoder_forward.1} parent=11 // pred_check
        %p374 = pneg %p156
      $region26: #{masked_autoencoder_forward.1} parent=11 // pred_check_branch
        %376 = sbr.rel (%p374) target = $region28
      $region27: #{masked_autoencoder_forward.1} parent=11 // pred_region
        _
      $region28: #{masked_autoencoder_forward.1} parent=11 // pred_fallthru
        _
      // Predicated region
      $region29: #{masked_autoencoder_forward.1} parent=11 // pred_check
        %p377 = pneg %p177
      $region30: #{masked_autoencoder_forward.1} parent=11 // pred_check_branch
        %379 = sbr.rel (%p377) target = $region32
      $region31: #{masked_autoencoder_forward.1} parent=11 // pred_region
        _
      $region32: #{masked_autoencoder_forward.1} parent=11 // pred_fallthru
        _
      // Predicated region
      $region33: #{masked_autoencoder_forward.1} parent=11 // pred_check
        %p380 = pneg %p198
      $region34: #{masked_autoencoder_forward.1} parent=11 // pred_check_branch
        %382 = sbr.rel (%p380) target = $region36
      $region35: #{masked_autoencoder_forward.1} parent=11 // pred_region
        _
      $region36: #{masked_autoencoder_forward.1} parent=11 // pred_fallthru
        _
      // Predicated region
      $region37: #{masked_autoencoder_forward.1} parent=11 // pred_check
        %p383 = pneg %p219
      $region38: #{masked_autoencoder_forward.1} parent=11 // pred_check_branch
        %385 = sbr.rel (%p383) target = $region40
      $region39: #{masked_autoencoder_forward.1} parent=11 // pred_region
        _
      $region40: #{masked_autoencoder_forward.1} parent=11 // pred_fallthru
        _
      // Predicated region
      $region41: #{masked_autoencoder_forward.1} parent=11 // pred_check
        %p386 = pneg %p240
      $region42: #{masked_autoencoder_forward.1} parent=11 // pred_check_branch
        %388 = sbr.rel (%p386) target = $region44
      $region43: #{masked_autoencoder_forward.1} parent=11 // pred_region
        _
      $region44: #{masked_autoencoder_forward.1} parent=11 // pred_fallthru
        _
      // Predicated region
      $region45: #{masked_autoencoder_forward.1} parent=11 // pred_check
        %p389 = pneg %p261
      $region46: #{masked_autoencoder_forward.1} parent=11 // pred_check_branch
        %391 = sbr.rel (%p389) target = $region48
      $region47: #{masked_autoencoder_forward.1} parent=11 // pred_region
        _
      $region48: #{masked_autoencoder_forward.1} parent=11 // pred_fallthru
        _
      // Predicated region
      $region49: #{masked_autoencoder_forward.1} parent=11 // pred_check
        %p392 = pneg %p282
      $region50: #{masked_autoencoder_forward.1} parent=11 // pred_check_branch
        %394 = sbr.rel (%p392) target = $region52
      $region51: #{masked_autoencoder_forward.1} parent=11 // pred_region
        _
      $region52: #{masked_autoencoder_forward.1} parent=11 // pred_fallthru
        _
      // Predicated region
      $region53: #{masked_autoencoder_forward.1} parent=11 // pred_check
        %p395 = pneg %p303
      $region54: #{masked_autoencoder_forward.1} parent=11 // pred_check_branch
        %397 = sbr.rel (%p395) target = $region56
      $region55: #{masked_autoencoder_forward.1} parent=11 // pred_region
        _
      $region56: #{masked_autoencoder_forward.1} parent=11 // pred_fallthru
        _
      // Predicated region
      $region57: #{masked_autoencoder_forward.1} parent=11 // pred_check
        %p398 = pneg %p324
      $region58: #{masked_autoencoder_forward.1} parent=11 // pred_check_branch
        %400 = sbr.rel (%p398) target = $region60
      $region59: #{masked_autoencoder_forward.1} parent=11 // pred_region
        _
      $region60: #{masked_autoencoder_forward.1} parent=11 // pred_fallthru
        _
    $region12: #{masked_autoencoder_forward.1} parent=5 // pred_fallthru
      _
    %p401 = scmp.lt.s32.totalorder %s20, 4
    // Predicated region
    $region61: #{masked_autoencoder_forward.1} parent=5 // pred_check
      %p402 = pneg %p401
    $region62: #{masked_autoencoder_forward.1} parent=5 // pred_check_branch
      %404 = sbr.rel (%p402) target = $region64
    $region63: #{masked_autoencoder_forward.1} parent=5 // pred_region
      // Predicated region
      $region65: #{masked_autoencoder_forward.1} parent=63 // pred_check
        %p405 = pneg %p40
      $region66: #{masked_autoencoder_forward.1} parent=63 // pred_check_branch
        %407 = sbr.rel (%p405) target = $region68
      $region67: #{masked_autoencoder_forward.1} parent=63 // pred_region
        %s408 = smul.u32 16, %s20
        %p409 = scmp.lt.s32.totalorder %s408, 63
        %s410 = scalar_select %p409, %s408, 63
        %s411 = smul.addr %s410, 8
        %s412 = scalar_lea.vmem %s0, %s411
        %s413 = smul.u32 16, %s20
      $region68: #{masked_autoencoder_forward.1} parent=63 // pred_fallthru
        _
      // Predicated region
      $region69: #{masked_autoencoder_forward.1} parent=63 // pred_check
        %p414 = pneg %p66
      $region70: #{masked_autoencoder_forward.1} parent=63 // pred_check_branch
        %416 = sbr.rel (%p414) target = $region72
      $region71: #{masked_autoencoder_forward.1} parent=63 // pred_region
        %s417 = smul.u32 4, %s20
        %p418 = scmp.lt.s32.totalorder %s417, 15
        %s419 = scalar_select %p418, %s417, 15
        %s420 = smul.addr %s419, 8
        %s421 = scalar_lea.vmem %s1, %s420
        %s422 = smul.u32 4, %s20
      $region72: #{masked_autoencoder_forward.1} parent=63 // pred_fallthru
        _
    $region64: #{masked_autoencoder_forward.1} parent=5 // pred_fallthru
      _
    %p423 = scmp.le.s32.totalorder 1, %s20
    %p424 = scmp.lt.s32.totalorder %s20, 5
    %p425 = pnand %p423, %p424
    %p426 = pneg %p425
    // Predicated region
    $region73: #{masked_autoencoder_forward.1} parent=5 // pred_check
      _
    $region74: #{masked_autoencoder_forward.1} parent=5 // pred_check_branch
      %428 = sbr.rel (%p425) target = $region76
    $region75: #{masked_autoencoder_forward.1} parent=5 // pred_region
      %s429 = ssub.s32 %s20, 1
      %s430 = smul.u32 16, %s25
      %p431 = scmp.lt.s32.totalorder %s430, 63
      %s432 = scalar_select %p431, %s430, 63
      %s433 = smul.addr %s432, 8
      %s434 = scalar_lea.vmem %s0, %s433
      %p435 = pneg %p46
      %p436 = pneg %p43
      %s437 = smul.u32 4, %s25
      %p438 = scmp.lt.s32.totalorder %s437, 15
      %s439 = scalar_select %p438, %s437, 15
      %s440 = smul.addr %s439, 8
      %s441 = scalar_lea.vmem %s1, %s440
      %p442 = pneg %p72
      %p443 = pneg %p69
      %p444 = pneg %p93
      %p445 = pneg %p90
      %p446 = pneg %p114
      %p447 = pneg %p111
      %p448 = pneg %p135
      %p449 = pneg %p132
      %p450 = pneg %p156
      %p451 = pneg %p153
      %p452 = pneg %p177
      %p453 = pneg %p174
      %p454 = pneg %p198
      %p455 = pneg %p195
      %p456 = pneg %p219
      %p457 = pneg %p216
      %p458 = pneg %p240
      %p459 = pneg %p237
      %p460 = pneg %p261
      %p461 = pneg %p258
      %p462 = pneg %p282
      %p463 = pneg %p279
      %p464 = pneg %p303
      %p465 = pneg %p300
      %p466 = pneg %p324
      %p467 = pneg %p321
      %p468 = pneg %p350
      %p469 = pneg %p347
      %s470 = smul.u32 16, %s25
      %p471 = scmp.lt.s32.totalorder %s470, 63
      %s472 = scalar_select %p471, %s470, 63
      %s473 = smul.addr %s472, 8
      %s474 = scalar_lea.vmem %s14, %s473
      %s475 = smul.u32 16, %s25
      %p476 = scmp.lt.s32.totalorder %s475, 63
      %s477 = scalar_select %p476, %s475, 63
      %s478 = smul.addr %s477, 8
      %s479 = scalar_lea.vmem %s0, %s478
      %s480 = smul.u32 16, %s25
      %s481 = smul.u32 4, %s25
      %p482 = scmp.lt.s32.totalorder %s481, 15
      %s483 = scalar_select %p482, %s481, 15
      %s484 = smul.addr %s483, 8
      %s485 = scalar_lea.vmem %s1, %s484
      %s486 = smul.u32 4, %s25
      %s487 = smul.u32 16, %s25
      %p488 = scmp.lt.s32.totalorder %s487, 63
      %s489 = scalar_select %p488, %s487, 63
      %s490 = smul.addr %s489, 8
      %s491 = scalar_lea.vmem %s14, %s490
      %s492 = smul.u32 16, %s25
      %v493 = vld [vmem:[%s479] sm:$0xff]
      %v494 = vld [vmem:[%s479 + $0x8] sm:$0xff]
      %v495 = vld [vmem:[%s479 + $0x10] sm:$0xff]
      %v496 = vld [vmem:[%s479 + $0x18] sm:$0xff]
      %v497 = vld [vmem:[%s479 + $0x20] sm:$0xff]
      %v498 = vld [vmem:[%s479 + $0x28] sm:$0xff]
      %v499 = vld [vmem:[%s479 + $0x30] sm:$0xff]
      %v500 = vld [vmem:[%s479 + $0x38] sm:$0xff]
      %v501 = vld [vmem:[%s479 + $0x40] sm:$0xff]
      %v502 = vld [vmem:[%s479 + $0x48] sm:$0xff]
      %v503 = vld [vmem:[%s479 + $0x50] sm:$0xff]
      %v504 = vld [vmem:[%s479 + $0x58] sm:$0xff]
      %v505 = vld [vmem:[%s479 + $0x60] sm:$0xff]
      %v506 = vld [vmem:[%s479 + $0x68] sm:$0xff]
      %v507 = vld [vmem:[%s479 + $0x70] sm:$0xff]
      %v508 = vld [vmem:[%s479 + $0x78] sm:$0xff]
      %v509 = vld [vmem:[%s485] sm:$0xff]
      %v510 = vld [vmem:[%s485 + $0x8] sm:$0xff]
      %v511 = vld [vmem:[%s485 + $0x10] sm:$0xff]
      %v512 = vld [vmem:[%s485 + $0x18] sm:$0xff]
      %v513 = vunpack.c.0.s8 %v509
      %v514 = vunpack.c.1.s8 %v509
      %v515 = vunpack.c.2.s8 %v509
      %v516 = vunpack.c.3.s8 %v509
      %v517 = vunpack.c.0.s8 %v510
      %v518 = vunpack.c.1.s8 %v510
      %v519 = vunpack.c.2.s8 %v510
      %v520 = vunpack.c.3.s8 %v510
      %v521 = vunpack.c.0.s8 %v511
      %v522 = vunpack.c.1.s8 %v511
      %v523 = vunpack.c.2.s8 %v511
      %v524 = vunpack.c.3.s8 %v511
      %v525 = vunpack.c.0.s8 %v512
      %v526 = vunpack.c.1.s8 %v512
      %v527 = vunpack.c.2.s8 %v512
      %v528 = vunpack.c.3.s8 %v512
      %v529 = vcvt.s32.f32 %v513
      %v530 = vcvt.s32.f32 %v514
      %v531 = vcvt.s32.f32 %v515
      %v532 = vcvt.s32.f32 %v516
      %v533 = vcvt.s32.f32 %v517
      %v534 = vcvt.s32.f32 %v518
      %v535 = vcvt.s32.f32 %v519
      %v536 = vcvt.s32.f32 %v520
      %v537 = vcvt.s32.f32 %v521
      %v538 = vcvt.s32.f32 %v522
      %v539 = vcvt.s32.f32 %v523
      %v540 = vcvt.s32.f32 %v524
      %v541 = vcvt.s32.f32 %v525
      %v542 = vcvt.s32.f32 %v526
      %v543 = vcvt.s32.f32 %v527
      %v544 = vcvt.s32.f32 %v528
      %v545 = vmul.f32 %v493, %v529
      %v546 = vmul.f32 %v494, %v530
      %v547 = vmul.f32 %v495, %v531
      %v548 = vmul.f32 %v496, %v532
      %v549 = vmul.f32 %v497, %v533
      %v550 = vmul.f32 %v498, %v534
      %v551 = vmul.f32 %v499, %v535
      %v552 = vmul.f32 %v500, %v536
      %v553 = vmul.f32 %v501, %v537
      %v554 = vmul.f32 %v502, %v538
      %v555 = vmul.f32 %v503, %v539
      %v556 = vmul.f32 %v504, %v540
      %v557 = vmul.f32 %v505, %v541
      %v558 = vmul.f32 %v506, %v542
      %v559 = vmul.f32 %v507, %v543
      %v560 = vmul.f32 %v508, %v544
      %v561 = vld [vmem:[%s2] sm:$0xff]
      %v562 = vld [vmem:[%s2 + $0x8] sm:$0xff]
      %v563 = vld [vmem:[%s2 + $0x10] sm:$0xff]
      %v564 = vld [vmem:[%s2 + $0x18] sm:$0xff]
      %v565 = vld [vmem:[%s3] sm:$0x1]
      %v567 = vperm.slane %v565, 0
      %vm569 = vcmask 261120
      %v571 = vsel %vm569, %v545, 0
      %v574 = vsel %vm569, %v546, 0
      %v577 = vsel %vm569, %v547, 0
      %v580 = vsel %vm569, %v548, 0
      %v583 = vsel %vm569, %v549, 0
      %v586 = vsel %vm569, %v550, 0
      %v589 = vsel %vm569, %v551, 0
      %v592 = vsel %vm569, %v552, 0
      %v595 = vsel %vm569, %v553, 0
      %v598 = vsel %vm569, %v554, 0
      %v601 = vsel %vm569, %v555, 0
      %v604 = vsel %vm569, %v556, 0
      %v607 = vsel %vm569, %v557, 0
      %v610 = vsel %vm569, %v558, 0
      %v613 = vsel %vm569, %v559, 0
      %v616 = vsel %vm569, %v560, 0
      %618 = vmatpush.msra.mxu0 0.0
      %619 = vmatpush.msra.mxu0 0.0
      %620 = vmatpush.msra.mxu0 0.0
      %621 = vmatpush.msra.mxu0 0.0
      %622 = vmatpush.msra.mxu0 0.0
      %623 = vmatpush.msra.mxu0 0.0
      %624 = vmatpush.msra.mxu0 0.0
      %625 = vmatpush.msra.mxu0 0.0
      %626 = vmatpush.msra.mxu0 0.0
      %627 = vmatpush.msra.mxu0 0.0
      %628 = vmatpush.msra.mxu0 0.0
      %629 = vmatpush.msra.mxu0 0.0
      %630 = vmatpush.msra.mxu0 %v564
      %631 = vmatpush.msra.mxu0 %v563
      %632 = vmatpush.msra.mxu0 %v562
      %633 = vmatpush.msra.mxu0 %v561
      %634 = vmatmul.f32.gmra.mxu0 %v571
      %v635 = vpop.f32.mrf.mxu0
      %v636 = vadd.f32 %v567, %v635
      %637 = vmatmul.f32.gmra.mxu0 %v574
      %v638 = vpop.f32.mrf.mxu0
      %v639 = vadd.f32 %v567, %v638
      %640 = vmatmul.f32.gmra.mxu0 %v577
      %v641 = vpop.f32.mrf.mxu0
      %v642 = vadd.f32 %v567, %v641
      %643 = vmatmul.f32.gmra.mxu0 %v580
      %v644 = vpop.f32.mrf.mxu0
      %v645 = vadd.f32 %v567, %v644
      %646 = vmatmul.f32.gmra.mxu0 %v583
      %v647 = vpop.f32.mrf.mxu0
      %v648 = vadd.f32 %v567, %v647
      %649 = vmatmul.f32.gmra.mxu0 %v586
      %v650 = vpop.f32.mrf.mxu0
      %v651 = vadd.f32 %v567, %v650
      %652 = vmatmul.f32.gmra.mxu0 %v589
      %v653 = vpop.f32.mrf.mxu0
      %v654 = vadd.f32 %v567, %v653
      %655 = vmatmul.f32.gmra.mxu0 %v592
      %v656 = vpop.f32.mrf.mxu0
      %v657 = vadd.f32 %v567, %v656
      %658 = vmatmul.f32.gmra.mxu0 %v595
      %v659 = vpop.f32.mrf.mxu0
      %v660 = vadd.f32 %v567, %v659
      %661 = vmatmul.f32.gmra.mxu0 %v598
      %v662 = vpop.f32.mrf.mxu0
      %v663 = vadd.f32 %v567, %v662
      %664 = vmatmul.f32.gmra.mxu0 %v601
      %v665 = vpop.f32.mrf.mxu0
      %v666 = vadd.f32 %v567, %v665
      %667 = vmatmul.f32.gmra.mxu0 %v604
      %v668 = vpop.f32.mrf.mxu0
      %v669 = vadd.f32 %v567, %v668
      %670 = vmatmul.f32.gmra.mxu0 %v607
      %v671 = vpop.f32.mrf.mxu0
      %v672 = vadd.f32 %v567, %v671
      %673 = vmatmul.f32.gmra.mxu0 %v610
      %v674 = vpop.f32.mrf.mxu0
      %v675 = vadd.f32 %v567, %v674
      %676 = vmatmul.f32.gmra.mxu0 %v613
      %v677 = vpop.f32.mrf.mxu0
      %v678 = vadd.f32 %v567, %v677
      %679 = vmatmul.f32.gmra.mxu0 %v616
      %v680 = vpop.f32.mrf.mxu0
      %v681 = vadd.f32 %v567, %v680
      %682 = vdwg.mxu0
      %v683 = vmax.f32 %v636, 0.0
      %v684 = vmax.f32 %v639, 0.0
      %v685 = vmax.f32 %v642, 0.0
      %v686 = vmax.f32 %v645, 0.0
      %v687 = vmax.f32 %v648, 0.0
      %v688 = vmax.f32 %v651, 0.0
      %v689 = vmax.f32 %v654, 0.0
      %v690 = vmax.f32 %v657, 0.0
      %v691 = vmax.f32 %v660, 0.0
      %v692 = vmax.f32 %v663, 0.0
      %v693 = vmax.f32 %v666, 0.0
      %v694 = vmax.f32 %v669, 0.0
      %v695 = vmax.f32 %v672, 0.0
      %v696 = vmax.f32 %v675, 0.0
      %v697 = vmax.f32 %v678, 0.0
      %v698 = vmax.f32 %v681, 0.0
      %v699 = vld [vmem:[%s4] sm:$0xff]
      %v700 = vld [vmem:[%s4 + $0x8] sm:$0xff]
      %v701 = vld [vmem:[%s5] sm:$0x1]
      %v703 = vperm.slane %v701, 0
      %vm705 = vcmask 130048
      %v707 = vsel %vm705, %v683, 0
      %v710 = vsel %vm705, %v684, 0
      %v713 = vsel %vm705, %v685, 0
      %v716 = vsel %vm705, %v686, 0
      %v719 = vsel %vm705, %v687, 0
      %v722 = vsel %vm705, %v688, 0
      %v725 = vsel %vm705, %v689, 0
      %v728 = vsel %vm705, %v690, 0
      %v731 = vsel %vm705, %v691, 0
      %v734 = vsel %vm705, %v692, 0
      %v737 = vsel %vm705, %v693, 0
      %v740 = vsel %vm705, %v694, 0
      %v743 = vsel %vm705, %v695, 0
      %v746 = vsel %vm705, %v696, 0
      %v749 = vsel %vm705, %v697, 0
      %v752 = vsel %vm705, %v698, 0
      %754 = vmatpush.msra.mxu0 0.0
      %755 = vmatpush.msra.mxu0 0.0
      %756 = vmatpush.msra.mxu0 0.0
      %757 = vmatpush.msra.mxu0 0.0
      %758 = vmatpush.msra.mxu0 0.0
      %759 = vmatpush.msra.mxu0 0.0
      %760 = vmatpush.msra.mxu0 0.0
      %761 = vmatpush.msra.mxu0 0.0
      %762 = vmatpush.msra.mxu0 0.0
      %763 = vmatpush.msra.mxu0 0.0
      %764 = vmatpush.msra.mxu0 0.0
      %765 = vmatpush.msra.mxu0 0.0
      %766 = vmatpush.msra.mxu0 0.0
      %767 = vmatpush.msra.mxu0 0.0
      %768 = vmatpush.msra.mxu0 %v700
      %769 = vmatpush.msra.mxu0 %v699
      %770 = vmatmul.f32.gmra.mxu0 %v707
      %v771 = vpop.f32.mrf.mxu0
      %v772 = vadd.f32 %v703, %v771
      %773 = vmatmul.f32.gmra.mxu0 %v710
      %v774 = vpop.f32.mrf.mxu0
      %v775 = vadd.f32 %v703, %v774
      %776 = vmatmul.f32.gmra.mxu0 %v713
      %v777 = vpop.f32.mrf.mxu0
      %v778 = vadd.f32 %v703, %v777
      %779 = vmatmul.f32.gmra.mxu0 %v716
      %v780 = vpop.f32.mrf.mxu0
      %v781 = vadd.f32 %v703, %v780
      %782 = vmatmul.f32.gmra.mxu0 %v719
      %v783 = vpop.f32.mrf.mxu0
      %v784 = vadd.f32 %v703, %v783
      %785 = vmatmul.f32.gmra.mxu0 %v722
      %v786 = vpop.f32.mrf.mxu0
      %v787 = vadd.f32 %v703, %v786
      %788 = vmatmul.f32.gmra.mxu0 %v725
      %v789 = vpop.f32.mrf.mxu0
      %v790 = vadd.f32 %v703, %v789
      %791 = vmatmul.f32.gmra.mxu0 %v728
      %v792 = vpop.f32.mrf.mxu0
      %v793 = vadd.f32 %v703, %v792
      %794 = vmatmul.f32.gmra.mxu0 %v731
      %v795 = vpop.f32.mrf.mxu0
      %v796 = vadd.f32 %v703, %v795
      %797 = vmatmul.f32.gmra.mxu0 %v734
      %v798 = vpop.f32.mrf.mxu0
      %v799 = vadd.f32 %v703, %v798
      %800 = vmatmul.f32.gmra.mxu0 %v737
      %v801 = vpop.f32.mrf.mxu0
      %v802 = vadd.f32 %v703, %v801
      %803 = vmatmul.f32.gmra.mxu0 %v740
      %v804 = vpop.f32.mrf.mxu0
      %v805 = vadd.f32 %v703, %v804
      %806 = vmatmul.f32.gmra.mxu0 %v743
      %v807 = vpop.f32.mrf.mxu0
      %v808 = vadd.f32 %v703, %v807
      %809 = vmatmul.f32.gmra.mxu0 %v746
      %v810 = vpop.f32.mrf.mxu0
      %v811 = vadd.f32 %v703, %v810
      %812 = vmatmul.f32.gmra.mxu0 %v749
      %v813 = vpop.f32.mrf.mxu0
      %v814 = vadd.f32 %v703, %v813
      %815 = vmatmul.f32.gmra.mxu0 %v752
      %v816 = vpop.f32.mrf.mxu0
      %v817 = vadd.f32 %v703, %v816
      %818 = vdwg.mxu0
      %v819 = vmax.f32 %v772, 0.0
      %v820 = vmax.f32 %v775, 0.0
      %v821 = vmax.f32 %v778, 0.0
      %v822 = vmax.f32 %v781, 0.0
      %v823 = vmax.f32 %v784, 0.0
      %v824 = vmax.f32 %v787, 0.0
      %v825 = vmax.f32 %v790, 0.0
      %v826 = vmax.f32 %v793, 0.0
      %v827 = vmax.f32 %v796, 0.0
      %v828 = vmax.f32 %v799, 0.0
      %v829 = vmax.f32 %v802, 0.0
      %v830 = vmax.f32 %v805, 0.0
      %v831 = vmax.f32 %v808, 0.0
      %v832 = vmax.f32 %v811, 0.0
      %v833 = vmax.f32 %v814, 0.0
      %v834 = vmax.f32 %v817, 0.0
      %v835 = vld [vmem:[%s6] sm:$0xff]
      %v836 = vld [vmem:[%s7] sm:$0x1]
      %v838 = vperm.slane %v836, 0
      %vm840 = vcmask 64512
      %v842 = vsel %vm840, %v819, 0
      %v845 = vsel %vm840, %v820, 0
      %v848 = vsel %vm840, %v821, 0
      %v851 = vsel %vm840, %v822, 0
      %v854 = vsel %vm840, %v823, 0
      %v857 = vsel %vm840, %v824, 0
      %v860 = vsel %vm840, %v825, 0
      %v863 = vsel %vm840, %v826, 0
      %v866 = vsel %vm840, %v827, 0
      %v869 = vsel %vm840, %v828, 0
      %v872 = vsel %vm840, %v829, 0
      %v875 = vsel %vm840, %v830, 0
      %v878 = vsel %vm840, %v831, 0
      %v881 = vsel %vm840, %v832, 0
      %v884 = vsel %vm840, %v833, 0
      %v887 = vsel %vm840, %v834, 0
      %889 = vmatpush.msra.mxu0 0.0
      %890 = vmatpush.msra.mxu0 0.0
      %891 = vmatpush.msra.mxu0 0.0
      %892 = vmatpush.msra.mxu0 0.0
      %893 = vmatpush.msra.mxu0 0.0
      %894 = vmatpush.msra.mxu0 0.0
      %895 = vmatpush.msra.mxu0 0.0
      %896 = vmatpush.msra.mxu0 0.0
      %897 = vmatpush.msra.mxu0 0.0
      %898 = vmatpush.msra.mxu0 0.0
      %899 = vmatpush.msra.mxu0 0.0
      %900 = vmatpush.msra.mxu0 0.0
      %901 = vmatpush.msra.mxu0 0.0
      %902 = vmatpush.msra.mxu0 0.0
      %903 = vmatpush.msra.mxu0 0.0
      %904 = vmatpush.msra.mxu0 %v835
      %905 = vmatmul.f32.gmra.mxu0 %v842
      %v906 = vpop.f32.mrf.mxu0
      %v907 = vadd.f32 %v838, %v906
      %908 = vmatmul.f32.gmra.mxu0 %v845
      %v909 = vpop.f32.mrf.mxu0
      %v910 = vadd.f32 %v838, %v909
      %911 = vmatmul.f32.gmra.mxu0 %v848
      %v912 = vpop.f32.mrf.mxu0
      %v913 = vadd.f32 %v838, %v912
      %914 = vmatmul.f32.gmra.mxu0 %v851
      %v915 = vpop.f32.mrf.mxu0
      %v916 = vadd.f32 %v838, %v915
      %917 = vmatmul.f32.gmra.mxu0 %v854
      %v918 = vpop.f32.mrf.mxu0
      %v919 = vadd.f32 %v838, %v918
      %920 = vmatmul.f32.gmra.mxu0 %v857
      %v921 = vpop.f32.mrf.mxu0
      %v922 = vadd.f32 %v838, %v921
      %923 = vmatmul.f32.gmra.mxu0 %v860
      %v924 = vpop.f32.mrf.mxu0
      %v925 = vadd.f32 %v838, %v924
      %926 = vmatmul.f32.gmra.mxu0 %v863
      %v927 = vpop.f32.mrf.mxu0
      %v928 = vadd.f32 %v838, %v927
      %929 = vmatmul.f32.gmra.mxu0 %v866
      %v930 = vpop.f32.mrf.mxu0
      %v931 = vadd.f32 %v838, %v930
      %932 = vmatmul.f32.gmra.mxu0 %v869
      %v933 = vpop.f32.mrf.mxu0
      %v934 = vadd.f32 %v838, %v933
      %935 = vmatmul.f32.gmra.mxu0 %v872
      %v936 = vpop.f32.mrf.mxu0
      %v937 = vadd.f32 %v838, %v936
      %938 = vmatmul.f32.gmra.mxu0 %v875
      %v939 = vpop.f32.mrf.mxu0
      %v940 = vadd.f32 %v838, %v939
      %941 = vmatmul.f32.gmra.mxu0 %v878
      %v942 = vpop.f32.mrf.mxu0
      %v943 = vadd.f32 %v838, %v942
      %944 = vmatmul.f32.gmra.mxu0 %v881
      %v945 = vpop.f32.mrf.mxu0
      %v946 = vadd.f32 %v838, %v945
      %947 = vmatmul.f32.gmra.mxu0 %v884
      %v948 = vpop.f32.mrf.mxu0
      %v949 = vadd.f32 %v838, %v948
      %950 = vmatmul.f32.gmra.mxu0 %v887
      %v951 = vpop.f32.mrf.mxu0
      %v952 = vadd.f32 %v838, %v951
      %953 = vdwg.mxu0
      %v954 = vld [vmem:[%s8] sm:$0xf]
      %v955 = vld [vmem:[%s9] sm:$0x1]
      %v957 = vperm.slane %v955, 0
      %vm959 = vcmask 31744
      %v961 = vsel %vm959, %v907, 0
      %v964 = vsel %vm959, %v910, 0
      %v967 = vsel %vm959, %v913, 0
      %v970 = vsel %vm959, %v916, 0
      %v973 = vsel %vm959, %v919, 0
      %v976 = vsel %vm959, %v922, 0
      %v979 = vsel %vm959, %v925, 0
      %v982 = vsel %vm959, %v928, 0
      %v985 = vsel %vm959, %v931, 0
      %v988 = vsel %vm959, %v934, 0
      %v991 = vsel %vm959, %v937, 0
      %v994 = vsel %vm959, %v940, 0
      %v997 = vsel %vm959, %v943, 0
      %v1000 = vsel %vm959, %v946, 0
      %v1003 = vsel %vm959, %v949, 0
      %v1006 = vsel %vm959, %v952, 0
      %vm1008 = vcmask 1043456
      %v1010 = vsel %vm1008, %v954, 0
      %1012 = vmatpush.msra.mxu0 0.0
      %1013 = vmatpush.msra.mxu0 0.0
      %1014 = vmatpush.msra.mxu0 0.0
      %1015 = vmatpush.msra.mxu0 0.0
      %1016 = vmatpush.msra.mxu0 0.0
      %1017 = vmatpush.msra.mxu0 0.0
      %1018 = vmatpush.msra.mxu0 0.0
      %1019 = vmatpush.msra.mxu0 0.0
      %1020 = vmatpush.msra.mxu0 0.0
      %1021 = vmatpush.msra.mxu0 0.0
      %1022 = vmatpush.msra.mxu0 0.0
      %1023 = vmatpush.msra.mxu0 0.0
      %1024 = vmatpush.msra.mxu0 0.0
      %1025 = vmatpush.msra.mxu0 0.0
      %1026 = vmatpush.msra.mxu0 0.0
      %1027 = vmatpush.msra.mxu0 %v1010
      %1028 = vmatmul.f32.gmra.mxu0 %v961
      %v1029 = vpop.f32.mrf.mxu0
      %v1030 = vadd.f32 %v957, %v1029
      %1031 = vmatmul.f32.gmra.mxu0 %v964
      %v1032 = vpop.f32.mrf.mxu0
      %v1033 = vadd.f32 %v957, %v1032
      %1034 = vmatmul.f32.gmra.mxu0 %v967
      %v1035 = vpop.f32.mrf.mxu0
      %v1036 = vadd.f32 %v957, %v1035
      %1037 = vmatmul.f32.gmra.mxu0 %v970
      %v1038 = vpop.f32.mrf.mxu0
      %v1039 = vadd.f32 %v957, %v1038
      %1040 = vmatmul.f32.gmra.mxu0 %v973
      %v1041 = vpop.f32.mrf.mxu0
      %v1042 = vadd.f32 %v957, %v1041
      %1043 = vmatmul.f32.gmra.mxu0 %v976
      %v1044 = vpop.f32.mrf.mxu0
      %v1045 = vadd.f32 %v957, %v1044
      %1046 = vmatmul.f32.gmra.mxu0 %v979
      %v1047 = vpop.f32.mrf.mxu0
      %v1048 = vadd.f32 %v957, %v1047
      %1049 = vmatmul.f32.gmra.mxu0 %v982
      %v1050 = vpop.f32.mrf.mxu0
      %v1051 = vadd.f32 %v957, %v1050
      %1052 = vmatmul.f32.gmra.mxu0 %v985
      %v1053 = vpop.f32.mrf.mxu0
      %v1054 = vadd.f32 %v957, %v1053
      %1055 = vmatmul.f32.gmra.mxu0 %v988
      %v1056 = vpop.f32.mrf.mxu0
      %v1057 = vadd.f32 %v957, %v1056
      %1058 = vmatmul.f32.gmra.mxu0 %v991
      %v1059 = vpop.f32.mrf.mxu0
      %v1060 = vadd.f32 %v957, %v1059
      %1061 = vmatmul.f32.gmra.mxu0 %v994
      %v1062 = vpop.f32.mrf.mxu0
      %v1063 = vadd.f32 %v957, %v1062
      %1064 = vmatmul.f32.gmra.mxu0 %v997
      %v1065 = vpop.f32.mrf.mxu0
      %v1066 = vadd.f32 %v957, %v1065
      %1067 = vmatmul.f32.gmra.mxu0 %v1000
      %v1068 = vpop.f32.mrf.mxu0
      %v1069 = vadd.f32 %v957, %v1068
      %1070 = vmatmul.f32.gmra.mxu0 %v1003
      %v1071 = vpop.f32.mrf.mxu0
      %v1072 = vadd.f32 %v957, %v1071
      %1073 = vmatmul.f32.gmra.mxu0 %v1006
      %v1074 = vpop.f32.mrf.mxu0
      %v1075 = vadd.f32 %v957, %v1074
      %1076 = vdwg.mxu0
      %v1077 = vmax.f32 %v1030, 0.0
      %v1078 = vmax.f32 %v1033, 0.0
      %v1079 = vmax.f32 %v1036, 0.0
      %v1080 = vmax.f32 %v1039, 0.0
      %v1081 = vmax.f32 %v1042, 0.0
      %v1082 = vmax.f32 %v1045, 0.0
      %v1083 = vmax.f32 %v1048, 0.0
      %v1084 = vmax.f32 %v1051, 0.0
      %v1085 = vmax.f32 %v1054, 0.0
      %v1086 = vmax.f32 %v1057, 0.0
      %v1087 = vmax.f32 %v1060, 0.0
      %v1088 = vmax.f32 %v1063, 0.0
      %v1089 = vmax.f32 %v1066, 0.0
      %v1090 = vmax.f32 %v1069, 0.0
      %v1091 = vmax.f32 %v1072, 0.0
      %v1092 = vmax.f32 %v1075, 0.0
      %v1093 = vld [vmem:[%s10] sm:$0xff]
      %v1094 = vld [vmem:[%s11] sm:$0x1]
      %v1096 = vperm.slane %v1094, 0
      %v1099 = vsel %vm840, %v1077, 0
      %v1102 = vsel %vm840, %v1078, 0
      %v1105 = vsel %vm840, %v1079, 0
      %v1108 = vsel %vm840, %v1080, 0
      %v1111 = vsel %vm840, %v1081, 0
      %v1114 = vsel %vm840, %v1082, 0
      %v1117 = vsel %vm840, %v1083, 0
      %v1120 = vsel %vm840, %v1084, 0
      %v1123 = vsel %vm840, %v1085, 0
      %v1126 = vsel %vm840, %v1086, 0
      %v1129 = vsel %vm840, %v1087, 0
      %v1132 = vsel %vm840, %v1088, 0
      %v1135 = vsel %vm840, %v1089, 0
      %v1138 = vsel %vm840, %v1090, 0
      %v1141 = vsel %vm840, %v1091, 0
      %v1144 = vsel %vm840, %v1092, 0
      %1146 = vmatpush.msra.mxu0 0.0
      %1147 = vmatpush.msra.mxu0 0.0
      %1148 = vmatpush.msra.mxu0 0.0
      %1149 = vmatpush.msra.mxu0 0.0
      %1150 = vmatpush.msra.mxu0 0.0
      %1151 = vmatpush.msra.mxu0 0.0
      %1152 = vmatpush.msra.mxu0 0.0
      %1153 = vmatpush.msra.mxu0 0.0
      %1154 = vmatpush.msra.mxu0 0.0
      %1155 = vmatpush.msra.mxu0 0.0
      %1156 = vmatpush.msra.mxu0 0.0
      %1157 = vmatpush.msra.mxu0 0.0
      %1158 = vmatpush.msra.mxu0 0.0
      %1159 = vmatpush.msra.mxu0 0.0
      %1160 = vmatpush.msra.mxu0 0.0
      %1161 = vmatpush.msra.mxu0 %v1093
      %1162 = vmatmul.f32.gmra.mxu0 %v1099
      %v1163 = vpop.f32.mrf.mxu0
      %v1164 = vadd.f32 %v1096, %v1163
      %1165 = vmatmul.f32.gmra.mxu0 %v1102
      %v1166 = vpop.f32.mrf.mxu0
      %v1167 = vadd.f32 %v1096, %v1166
      %1168 = vmatmul.f32.gmra.mxu0 %v1105
      %v1169 = vpop.f32.mrf.mxu0
      %v1170 = vadd.f32 %v1096, %v1169
      %1171 = vmatmul.f32.gmra.mxu0 %v1108
      %v1172 = vpop.f32.mrf.mxu0
      %v1173 = vadd.f32 %v1096, %v1172
      %1174 = vmatmul.f32.gmra.mxu0 %v1111
      %v1175 = vpop.f32.mrf.mxu0
      %v1176 = vadd.f32 %v1096, %v1175
      %1177 = vmatmul.f32.gmra.mxu0 %v1114
      %v1178 = vpop.f32.mrf.mxu0
      %v1179 = vadd.f32 %v1096, %v1178
      %1180 = vmatmul.f32.gmra.mxu0 %v1117
      %v1181 = vpop.f32.mrf.mxu0
      %v1182 = vadd.f32 %v1096, %v1181
      %1183 = vmatmul.f32.gmra.mxu0 %v1120
      %v1184 = vpop.f32.mrf.mxu0
      %v1185 = vadd.f32 %v1096, %v1184
      %1186 = vmatmul.f32.gmra.mxu0 %v1123
      %v1187 = vpop.f32.mrf.mxu0
      %v1188 = vadd.f32 %v1096, %v1187
      %1189 = vmatmul.f32.gmra.mxu0 %v1126
      %v1190 = vpop.f32.mrf.mxu0
      %v1191 = vadd.f32 %v1096, %v1190
      %1192 = vmatmul.f32.gmra.mxu0 %v1129
      %v1193 = vpop.f32.mrf.mxu0
      %v1194 = vadd.f32 %v1096, %v1193
      %1195 = vmatmul.f32.gmra.mxu0 %v1132
      %v1196 = vpop.f32.mrf.mxu0
      %v1197 = vadd.f32 %v1096, %v1196
      %1198 = vmatmul.f32.gmra.mxu0 %v1135
      %v1199 = vpop.f32.mrf.mxu0
      %v1200 = vadd.f32 %v1096, %v1199
      %1201 = vmatmul.f32.gmra.mxu0 %v1138
      %v1202 = vpop.f32.mrf.mxu0
      %v1203 = vadd.f32 %v1096, %v1202
      %1204 = vmatmul.f32.gmra.mxu0 %v1141
      %v1205 = vpop.f32.mrf.mxu0
      %v1206 = vadd.f32 %v1096, %v1205
      %1207 = vmatmul.f32.gmra.mxu0 %v1144
      %v1208 = vpop.f32.mrf.mxu0
      %v1209 = vadd.f32 %v1096, %v1208
      %1210 = vdwg.mxu0
      %v1211 = vmax.f32 %v1164, 0.0
      %v1212 = vmax.f32 %v1167, 0.0
      %v1213 = vmax.f32 %v1170, 0.0
      %v1214 = vmax.f32 %v1173, 0.0
      %v1215 = vmax.f32 %v1176, 0.0
      %v1216 = vmax.f32 %v1179, 0.0
      %v1217 = vmax.f32 %v1182, 0.0
      %v1218 = vmax.f32 %v1185, 0.0
      %v1219 = vmax.f32 %v1188, 0.0
      %v1220 = vmax.f32 %v1191, 0.0
      %v1221 = vmax.f32 %v1194, 0.0
      %v1222 = vmax.f32 %v1197, 0.0
      %v1223 = vmax.f32 %v1200, 0.0
      %v1224 = vmax.f32 %v1203, 0.0
      %v1225 = vmax.f32 %v1206, 0.0
      %v1226 = vmax.f32 %v1209, 0.0
      %v1227 = vld [vmem:[%s12] sm:$0xff]
      %v1228 = vld [vmem:[%s12 + $0x8] sm:$0xff]
      %v1229 = vld [vmem:[%s13] sm:$0x1]
      %v1231 = vperm.slane %v1229, 0
      %v1234 = vsel %vm705, %v1211, 0
      %v1237 = vsel %vm705, %v1212, 0
      %v1240 = vsel %vm705, %v1213, 0
      %v1243 = vsel %vm705, %v1214, 0
      %v1246 = vsel %vm705, %v1215, 0
      %v1249 = vsel %vm705, %v1216, 0
      %v1252 = vsel %vm705, %v1217, 0
      %v1255 = vsel %vm705, %v1218, 0
      %v1258 = vsel %vm705, %v1219, 0
      %v1261 = vsel %vm705, %v1220, 0
      %v1264 = vsel %vm705, %v1221, 0
      %v1267 = vsel %vm705, %v1222, 0
      %v1270 = vsel %vm705, %v1223, 0
      %v1273 = vsel %vm705, %v1224, 0
      %v1276 = vsel %vm705, %v1225, 0
      %v1279 = vsel %vm705, %v1226, 0
      %1281 = vmatpush.msra.mxu0 0.0
      %1282 = vmatpush.msra.mxu0 0.0
      %1283 = vmatpush.msra.mxu0 0.0
      %1284 = vmatpush.msra.mxu0 0.0
      %1285 = vmatpush.msra.mxu0 0.0
      %1286 = vmatpush.msra.mxu0 0.0
      %1287 = vmatpush.msra.mxu0 0.0
      %1288 = vmatpush.msra.mxu0 0.0
      %1289 = vmatpush.msra.mxu0 0.0
      %1290 = vmatpush.msra.mxu0 0.0
      %1291 = vmatpush.msra.mxu0 0.0
      %1292 = vmatpush.msra.mxu0 0.0
      %1293 = vmatpush.msra.mxu0 0.0
      %1294 = vmatpush.msra.mxu0 0.0
      %1295 = vmatpush.msra.mxu0 %v1228
      %1296 = vmatpush.msra.mxu0 %v1227
      %1297 = vmatmul.f32.gmra.mxu0 %v1234
      %v1298 = vpop.f32.mrf.mxu0
      %v1299 = vadd.f32 %v1231, %v1298
      %1300 = vmatmul.f32.gmra.mxu0 %v1237
      %v1301 = vpop.f32.mrf.mxu0
      %v1302 = vadd.f32 %v1231, %v1301
      %1303 = vmatmul.f32.gmra.mxu0 %v1240
      %v1304 = vpop.f32.mrf.mxu0
      %v1305 = vadd.f32 %v1231, %v1304
      %1306 = vmatmul.f32.gmra.mxu0 %v1243
      %v1307 = vpop.f32.mrf.mxu0
      %v1308 = vadd.f32 %v1231, %v1307
      %1309 = vmatmul.f32.gmra.mxu0 %v1246
      %v1310 = vpop.f32.mrf.mxu0
      %v1311 = vadd.f32 %v1231, %v1310
      %1312 = vmatmul.f32.gmra.mxu0 %v1249
      %v1313 = vpop.f32.mrf.mxu0
      %v1314 = vadd.f32 %v1231, %v1313
      %1315 = vmatmul.f32.gmra.mxu0 %v1252
      %v1316 = vpop.f32.mrf.mxu0
      %v1317 = vadd.f32 %v1231, %v1316
      %1318 = vmatmul.f32.gmra.mxu0 %v1255
      %v1319 = vpop.f32.mrf.mxu0
      %v1320 = vadd.f32 %v1231, %v1319
      %1321 = vmatmul.f32.gmra.mxu0 %v1258
      %v1322 = vpop.f32.mrf.mxu0
      %v1323 = vadd.f32 %v1231, %v1322
      %1324 = vmatmul.f32.gmra.mxu0 %v1261
      %v1325 = vpop.f32.mrf.mxu0
      %v1326 = vadd.f32 %v1231, %v1325
      %1327 = vmatmul.f32.gmra.mxu0 %v1264
      %v1328 = vpop.f32.mrf.mxu0
      %v1329 = vadd.f32 %v1231, %v1328
      %1330 = vmatmul.f32.gmra.mxu0 %v1267
      %v1331 = vpop.f32.mrf.mxu0
      %v1332 = vadd.f32 %v1231, %v1331
      %1333 = vmatmul.f32.gmra.mxu0 %v1270
      %v1334 = vpop.f32.mrf.mxu0
      %v1335 = vadd.f32 %v1231, %v1334
      %1336 = vmatmul.f32.gmra.mxu0 %v1273
      %v1337 = vpop.f32.mrf.mxu0
      %v1338 = vadd.f32 %v1231, %v1337
      %1339 = vmatmul.f32.gmra.mxu0 %v1276
      %v1340 = vpop.f32.mrf.mxu0
      %v1341 = vadd.f32 %v1231, %v1340
      %1342 = vmatmul.f32.gmra.mxu0 %v1279
      %v1343 = vpop.f32.mrf.mxu0
      %v1344 = vadd.f32 %v1231, %v1343
      %1345 = vdwg.mxu0
      %1346 = vst.msk [vmem:[%s491] sm:$0xff] %vm569, %v1299
      %1347 = vst.msk [vmem:[%s491 + $0x8] sm:$0xff] %vm569, %v1302
      %1348 = vst.msk [vmem:[%s491 + $0x10] sm:$0xff] %vm569, %v1305
      %1349 = vst.msk [vmem:[%s491 + $0x18] sm:$0xff] %vm569, %v1308
      %1350 = vst.msk [vmem:[%s491 + $0x20] sm:$0xff] %vm569, %v1311
      %1351 = vst.msk [vmem:[%s491 + $0x28] sm:$0xff] %vm569, %v1314
      %1352 = vst.msk [vmem:[%s491 + $0x30] sm:$0xff] %vm569, %v1317
      %1353 = vst.msk [vmem:[%s491 + $0x38] sm:$0xff] %vm569, %v1320
      %1354 = vst.msk [vmem:[%s491 + $0x40] sm:$0xff] %vm569, %v1323
      %1355 = vst.msk [vmem:[%s491 + $0x48] sm:$0xff] %vm569, %v1326
      %1356 = vst.msk [vmem:[%s491 + $0x50] sm:$0xff] %vm569, %v1329
      %1357 = vst.msk [vmem:[%s491 + $0x58] sm:$0xff] %vm569, %v1332
      %1358 = vst.msk [vmem:[%s491 + $0x60] sm:$0xff] %vm569, %v1335
      %1359 = vst.msk [vmem:[%s491 + $0x68] sm:$0xff] %vm569, %v1338
      %1360 = vst.msk [vmem:[%s491 + $0x70] sm:$0xff] %vm569, %v1341
      %1361 = vst.msk [vmem:[%s491 + $0x78] sm:$0xff] %vm569, %v1344
      %s1362 = smul.u32 16, %s25
      %p1363 = scmp.lt.s32.totalorder %s1362, 63
      %s1364 = scalar_select %p1363, %s1362, 63
      %s1365 = smul.addr %s1364, 8
      %s1366 = scalar_lea.vmem %s14, %s1365
      // Predicated region
      $region77: #{masked_autoencoder_forward.1} parent=75 // pred_check
        %p1367 = pneg %p347
      $region78: #{masked_autoencoder_forward.1} parent=75 // pred_check_branch
        %1369 = sbr.rel (%p1367) target = $region80
      $region79: #{masked_autoencoder_forward.1} parent=75 // pred_region
        %s1370 = smul.u32 16, %s25
      $region80: #{masked_autoencoder_forward.1} parent=75 // pred_fallthru
        _
    $region76: #{masked_autoencoder_forward.1} parent=5 // pred_fallthru
      _
    %p1371 = scmp.le.s32.totalorder 2, %s20
    // Predicated region
    $region81: #{masked_autoencoder_forward.1} parent=5 // pred_check
      %p1372 = pneg %p1371
    $region82: #{masked_autoencoder_forward.1} parent=5 // pred_check_branch
      %1374 = sbr.rel (%p1372) target = $region84
    $region83: #{masked_autoencoder_forward.1} parent=5 // pred_region
      %s1375 = ssub.s32 %s20, 2
      // Predicated region
      $region85: #{masked_autoencoder_forward.1} parent=83 // pred_check
        %p1376 = pneg %p353
      $region86: #{masked_autoencoder_forward.1} parent=83 // pred_check_branch
        %1378 = sbr.rel (%p1376) target = $region88
      $region87: #{masked_autoencoder_forward.1} parent=83 // pred_region
        %s1379 = smul.u32 16, %s26
        %p1380 = scmp.lt.s32.totalorder %s1379, 63
        %s1381 = scalar_select %p1380, %s1379, 63
        %s1382 = smul.addr %s1381, 8
        %s1383 = scalar_lea.vmem %s14, %s1382
      $region88: #{masked_autoencoder_forward.1} parent=83 // pred_fallthru
        _
    $region84: #{masked_autoencoder_forward.1} parent=5 // pred_fallthru
      _
  $region6: #{masked_autoencoder_forward.1} parent=0 // loop_footer
    %s24 = sadd.s32 1, %s20
  $region7: #{masked_autoencoder_forward.1} parent=0 // loop_footer_branch
    %19 = sbr.rel target = $region3
  $region8: #{masked_autoencoder_forward.1} parent=0 // loop_exit
    _

</llo_original>
